<compile_context>
chip_gen: v5e
topology: v5e:2x2
jax: 0.10.0
libtpu: 0.0.40
codegen_flags: <defaults>
</compile_context>

<pallas_src>
import functools
import math

import jax
import jax.numpy as jnp
from jax import lax
from jax.experimental import pallas as pl
from jax.experimental.pallas import tpu as pltpu


# Byte budget for the double-buffered x + out tiles (2 live copies of each).
_TILE_BYTE_BUDGET = 16 * 1024 * 1024
# Scoped-VMEM limit for Mosaic: headroom on every generation
# (v5e/v6e: 128 MiB physical, v7x: 64 MiB per TensorCore).
_VMEM_LIMIT_BYTES = 32 * 1024 * 1024
# Problems smaller than this are not worth splitting across TensorCores.
_SPLIT_BYTES = 1 * 1024 * 1024


# ---------------------------------------------------------------------------
# Module-init: sin/cos positional-encoding table (identical to PyTorch buffer,
# squeezed to 2-D and stored lane-dense as (max_len, d_model)).
# ---------------------------------------------------------------------------
def make_pe_table(max_len: int, d_model: int, dtype=jnp.float32):
    position = jnp.arange(max_len, dtype=jnp.float32)[:, None]                 # (L, 1)
    div_term = jnp.exp(jnp.arange(0, d_model, 2, dtype=jnp.float32)
                       * (-math.log(10000.0) / d_model))                       # (ceil(D/2),)
    ang = position * div_term                                                  # (L, ceil(D/2))
    pe = jnp.zeros((max_len, 2 * ang.shape[1]), jnp.float32)
    pe = pe.at[:, 0::2].set(jnp.sin(ang))
    pe = pe.at[:, 1::2].set(jnp.cos(ang))
    return pe[:, :d_model].astype(dtype)   # cast ONCE at init, not in the kernel


# ---------------------------------------------------------------------------
# Kernels
# ---------------------------------------------------------------------------
def _posenc_kernel_lane_dense(x_ref, pe_ref, o_ref, *, batch):
    # x_ref / o_ref: (tT, B*D) lane-dense;  pe_ref: (tT, D)
    pe = pe_ref[...]
    if batch > 1:
        pe = jnp.tile(pe, (1, batch))   # repeat the D-vector across batch along lanes
    o_ref[...] = x_ref[...] + pe
    # TODO(synk): nn.Dropout(p=0.1) is identity in eval mode; a training-mode
    # forward would use pltpu.prng_seed + pltpu.stateful_bernoulli here.


def _posenc_kernel_3d(x_ref, pe_ref, o_ref):
    # x_ref / o_ref: (tT, tB, D);  pe_ref: (tT, D)
    pe = lax.broadcast_in_dim(pe_ref[...], x_ref.shape, (0, 2))   # no relayout copy
    o_ref[...] = x_ref[...] + pe


# ---------------------------------------------------------------------------
# Tile selection (byte-budget aware)
# ---------------------------------------------------------------------------
def _choose_rows(n_rows: int, row_bytes: int) -> int:
    """Rows per T-tile.  Returns either n_rows itself or a multiple of 8.

    The budget covers the double-buffered x and out tiles: 4 * tT * row_bytes.
    """
    cap = max(_TILE_BYTE_BUDGET // (4 * row_bytes), 1)
    if n_rows <= cap:
        # Whole T fits in one tile.  If that leaves a single grid step but the
        # problem is bandwidth-limited, split T in two so both TensorCores
        # (v7x megacore) get a parallel slice.
        if n_rows >= 16 and n_rows * row_bytes >= _SPLIT_BYTES:
            half = (n_rows + 1) // 2
            return ((half + 7) // 8) * 8
        return n_rows
    return min(max((cap // 8) * 8, 8), n_rows)


def _choose_batch_tile(batch: int, d_model: int, itemsize: int) -> int:
    """Batch rows per tile for the 3-D path.  Returns batch or a multiple of 8."""
    if 4 * 8 * batch * d_model * itemsize <= _TILE_BYTE_BUDGET:
        return batch
    cap = max(_TILE_BYTE_BUDGET // (4 * 8 * d_model * itemsize), 1)
    return min(max((cap // 8) * 8, 8), batch)


def _pe_operand(pe_table, t_tile: int, seq_len: int):
    """pe operand whose block (t_tile, D) satisfies the sublane rule.

    t_tile is either a multiple of 8 (address pe_table directly, no copy) or the
    whole sequence (tiny/ragged T): present an exact (T, D) view in that case.
    """
    if t_tile % 8 == 0:
        return pe_table
    return lax.slice_in_dim(pe_table, 0, seq_len, axis=0)


# ---------------------------------------------------------------------------
# Forward wrappers
# ---------------------------------------------------------------------------
def _forward_lane_dense(x, pe_table, donate_x):
    seq, batch, d_model = x.shape
    itemsize = x.dtype.itemsize
    x2 = x.reshape(seq, batch * d_model)                  # contiguous -> free view
    t_tile = _choose_rows(seq, batch * d_model * itemsize)
    pe_in = _pe_operand(pe_table, t_tile, seq)
    out2 = pl.pallas_call(
        functools.partial(_posenc_kernel_lane_dense, batch=batch),
        out_shape=jax.ShapeDtypeStruct((seq, batch * d_model), x.dtype),
        grid_spec=pl.GridSpec(
            grid=(pl.cdiv(seq, t_tile),),
            in_specs=[
                pl.BlockSpec((t_tile, batch * d_model), lambda i: (i, 0)),
                pl.BlockSpec((t_tile, d_model), lambda i: (i, 0)),
            ],
            out_specs=pl.BlockSpec((t_tile, batch * d_model), lambda i: (i, 0)),
        ),
        compiler_params=pltpu.CompilerParams(
            dimension_semantics=("parallel",),
            vmem_limit_bytes=_VMEM_LIMIT_BYTES,
        ),
        input_output_aliases=({0: 0} if donate_x else {}),
    )(x2, pe_in)
    return out2.reshape(seq, batch, d_model)


def _forward_3d(x, pe_table, donate_x):
    seq, batch, d_model = x.shape
    itemsize = x.dtype.itemsize
    b_tile = _choose_batch_tile(batch, d_model, itemsize)
    t_tile = _choose_rows(seq, b_tile * d_model * itemsize)
    pe_in = _pe_operand(pe_table, t_tile, seq)
    return pl.pallas_call(
        _posenc_kernel_3d,
        out_shape=jax.ShapeDtypeStruct((seq, batch, d_model), x.dtype),
        grid_spec=pl.GridSpec(
            grid=(pl.cdiv(seq, t_tile), pl.cdiv(batch, b_tile)),
            in_specs=[
                pl.BlockSpec((t_tile, b_tile, d_model), lambda i, j: (i, j, 0)),
                pl.BlockSpec((t_tile, d_model), lambda i, j: (i, 0)),
            ],
            out_specs=pl.BlockSpec((t_tile, b_tile, d_model), lambda i, j: (i, j, 0)),
        ),
        compiler_params=pltpu.CompilerParams(
            dimension_semantics=("parallel", "parallel"),
            vmem_limit_bytes=_VMEM_LIMIT_BYTES,
        ),
        input_output_aliases=({0: 0} if donate_x else {}),
    )(x, pe_in)


def positional_encoding_forward(x, pe_table, *, donate_x=False):
    """x: (T, B, D) seq-first; pe_table: (max_len, D) in x.dtype.  Returns x + pe[:T].

    donate_x=True aliases the output onto x's HBM buffer (use only when x is
    dead after this call, as in a transformer stack).
    """
    seq, batch, d_model = x.shape
    if pe_table.dtype != x.dtype:
        pe_table = pe_table.astype(x.dtype)   # normally a no-op (built in x.dtype at init)
    itemsize = x.dtype.itemsize
    lane_sparse = (d_model % 128 != 0) or (batch < 8)
    fits_lane_dense = 4 * 8 * batch * d_model * itemsize <= _TILE_BYTE_BUDGET
    if lane_sparse and fits_lane_dense:
        return _forward_lane_dense(x, pe_table, donate_x)
    return _forward_3d(x, pe_table, donate_x)
    # TODO(synk): for best end-to-end perf this elementwise add should be fused
    # into the adjacent embedding/projection kernel rather than a standalone call.


# ---------------------------------------------------------------------------
# Pure-JAX reference
# ---------------------------------------------------------------------------
def reference_forward(x, pe_table):
    seq = x.shape[0]
    return x + pe_table[:seq][:, None, :].astype(x.dtype)


if __name__ == "__main__":
    d_model, max_len = 32, 5000
    seq, batch = 8, 2

    key = jax.random.PRNGKey(0)
    k1, k2, k3 = jax.random.split(key, 3)

    pe_table = make_pe_table(max_len, d_model)            # registered buffer (init-time)

    # Main shapes consistent with the module: seq=8, batch=2, d_model=32
    # (lane-dense 2-D path, whole problem in one grid step).
    x = jax.random.normal(k1, (seq, batch, d_model), jnp.float32)
    out = positional_encoding_forward(x, pe_table)
    jax.block_until_ready(out)
    assert out.shape == (seq, batch, d_model)
    assert jnp.allclose(out, reference_forward(x, pe_table), atol=1e-5, rtol=1e-5)

    # 3-D path: D a multiple of 128 and B >= 8, tiled over (T, B).
    pe128 = make_pe_table(max_len, 128)
    x2 = jax.random.normal(k2, (16, 8, 128), jnp.float32)
    out2 = positional_encoding_forward(x2, pe128)
    jax.block_until_ready(out2)
    assert jnp.allclose(out2, reference_forward(x2, pe128), atol=1e-5, rtol=1e-5)

    # Ragged T (not a multiple of 8): whole-sequence tile + exact pe view.
    x3 = jax.random.normal(k3, (12, batch, d_model), jnp.float32)
    out3 = positional_encoding_forward(x3, pe_table)
    jax.block_until_ready(out3)
    assert jnp.allclose(out3, reference_forward(x3, pe_table), atol=1e-5, rtol=1e-5)

    print("KERNEL_OK")
</pallas_src>

<mosaic_0001>
module attributes {stable_mosaic.version = 11 : i64} {
  func.func @_posenc_kernel_lane_dense(%arg0: i32, %arg1: memref<8x64xf32, #tpu.memory_space<vmem>>, %arg2: memref<8x32xf32, #tpu.memory_space<vmem>>, %arg3: memref<8x64xf32, #tpu.memory_space<vmem>>) attributes {dimension_semantics = [#tpu.dimension_semantics<parallel>], iteration_bounds = array<i64: 1>, scalar_prefetch = 0 : i64, scratch_operands = 0 : i64, tpu.core_type = #tpu.core_type<tc>, window_params = [{transform_indices = @transform_0, window_bounds = array<i64: 8, 64>}, {transform_indices = @transform_1, window_bounds = array<i64: 8, 32>}, {transform_indices = @transform_2, window_bounds = array<i64: 8, 64>}]} {
    %c0 = arith.constant 0 : index
    %c0_0 = arith.constant 0 : index
    %0 = vector.load %arg2[%c0, %c0_0] : memref<8x32xf32, #tpu.memory_space<vmem>>, vector<8x32xf32>
    %1 = tpu.concatenate %0, %0 in 1 : vector<8x32xf32>, vector<8x32xf32> -> vector<8x64xf32>
    %c0_1 = arith.constant 0 : index
    %c0_2 = arith.constant 0 : index
    %2 = vector.load %arg1[%c0_1, %c0_2] : memref<8x64xf32, #tpu.memory_space<vmem>>, vector<8x64xf32>
    %3 = arith.addf %2, %1 : vector<8x64xf32>
    %c0_3 = arith.constant 0 : index
    %c0_4 = arith.constant 0 : index
    %4 = vector.load %arg3[%c0_3, %c0_4] : memref<8x64xf32, #tpu.memory_space<vmem>>, vector<8x64xf32>
    tpu.vector_store %arg3[%c0_3, %c0_4], %3 {strides = array<i32>} : memref<8x64xf32, #tpu.memory_space<vmem>>, vector<8x64xf32>,
    return
  }
  func.func @transform_0(%arg0: i32) -> (i32, i32) {
    %c0_i32 = arith.constant 0 : i32
    %c0_i32_0 = arith.constant 0 : i32
    return %arg0, %c0_i32 : i32, i32
  }
  func.func @transform_1(%arg0: i32) -> (i32, i32) {
    %c0_i32 = arith.constant 0 : i32
    %c0_i32_0 = arith.constant 0 : i32
    return %arg0, %c0_i32 : i32, i32
  }
  func.func @transform_2(%arg0: i32) -> (i32, i32) {
    %c0_i32 = arith.constant 0 : i32
    %c0_i32_0 = arith.constant 0 : i32
    return %arg0, %c0_i32 : i32, i32
  }
}

</mosaic_0001>

<llo_original>
// kernel: tpu_custom_call.1
$region0: #{tpu_custom_call.1}
  #allocation0 [shape = 'u32[]', space=smem, size = 0x4, offset = 0x4, fixed_abs, tag = 'smem constant byte address 0x4 - core index']
  #allocation1 [shape = 'u32[72,128]{1,0:T(1,128)}', space=vmem, size = 0x9000, scoped, tag = 'internal scratch']
  %s0 = inlined_call_operand.vmem [shape: f32[8,64], index: 0, kind: input, shape index: {}]
  %s1 = inlined_call_operand.vmem [shape: f32[5000,32], index: 1, kind: input, shape index: {}]
  %s2 = inlined_call_operand.hbm [shape: f32[8,64], index: 2, kind: output, shape index: {}]
  %s3 = sld [smem:[#allocation0]]
  $region18: #{tpu_custom_call.1} parent=0
    _
  %s5 = ssub.s32 1, %s3
  %s6 = scalar_select 0, %s5, %s3
  $region1: #{tpu_custom_call.1} parent=0
    #allocation2 [shape = 'u8[4096]{0}', space=vmem, size = 0x1000, scoped, tag = 'output window, operand 0, single buffered']
    #allocation3 [shape = 's32[1]{0}', space=sflag, size = 0x4, scoped, tag = 'scoped memory for tpu_custom_call.1']
    %7 = vsyncpa [#allocation3], 0
    // Predicated region
    $region2: #{tpu_custom_call.1} parent=1 // pred_check
      _
    $region3: #{tpu_custom_call.1} parent=1 // pred_check_branch
      %9 = sbr.rel (0) target = $region5
    $region4: #{tpu_custom_call.1} parent=1 // pred_region
      _
    $region5: #{tpu_custom_call.1} parent=1 // pred_fallthru
      _
    // Predicated region
    $region6: #{tpu_custom_call.1} parent=1 // pred_check
      _
    $region7: #{tpu_custom_call.1} parent=1 // pred_check_branch
      %11 = sbr.rel (0) target = $region9
    $region8: #{tpu_custom_call.1} parent=1 // pred_region
      _
    $region9: #{tpu_custom_call.1} parent=1 // pred_fallthru
      _
    %v12 = vld [vmem:[%s1] sm:$0xff]
    %14 = vrot.lane.b32.xlu0 %v12, 32
    %v15 = vpop.permute.xlu0 %14
    %vm17 = vcmask 261120
    %v18 = vsel %vm17, %v12, %v15
    %v19 = vld [vmem:[%s0] sm:$0xff]
    %v20 = vadd.f32 %v19, %v18
    %vm21 = vcmask 523264
    %22 = vst.msk [vmem:[#allocation2] sm:$0xff] %vm21, %v20
    // Predicated region
    $region10: #{tpu_custom_call.1} parent=1 // pred_check
      _
    $region11: #{tpu_custom_call.1} parent=1 // pred_check_branch
      %24 = sbr.rel (0) target = $region13
    $region12: #{tpu_custom_call.1} parent=1 // pred_region
      %26 = vsyncadd [#allocation3], 0
      %s28 = sshll.u32 [#allocation2], 4
      %s29 = int_to_ptr.vmem [resolvable:$true] %s28
      %s30 = sshll.u32 %s2, 4
      %s31 = int_to_ptr.hbm [resolvable:$true] %s30
      %33 = dma.vmem_to_hbm [thread:$0]  %s29, 128, %s31, [#allocation3]
    $region13: #{tpu_custom_call.1} parent=1 // pred_fallthru
      _
    // Predicated region
    $region14: #{tpu_custom_call.1} parent=1 // pred_check
      _
    $region15: #{tpu_custom_call.1} parent=1 // pred_check_branch
      %35 = sbr.rel (0) target = $region17
    $region16: #{tpu_custom_call.1} parent=1 // pred_region
      %37 = dma.done [#allocation3], 128
    $region17: #{tpu_custom_call.1} parent=1 // pred_fallthru
      _
    %38 = vsyncpa [#allocation3], 1

</llo_original>
